<compile_context>
chip_gen: v7x
topology: tpu7x:2x2x1
jax: 0.10.0
libtpu: 0.0.40
codegen_flags: <defaults>
</compile_context>

<pallas_src>
import functools

import jax
import jax.numpy as jnp
from jax.experimental import pallas as pl
from jax.experimental.pallas import tpu as pltpu


def _round_up(x, m):
    return ((x + m - 1) // m) * m


def _bspline_kernel(t_ref, grid_ref, out_ref, w_ref, *, inv_dt, nc_valid):
    """t_ref   : VMEM (TB, 1)      f32  raw query times for this batch tile
       grid_ref: VMEM (NCP, TD)    f32  control-point table slab (D tile j)
       out_ref : VMEM (TB, TD)     f32  output tile
       w_ref   : VMEM (TB, NCP)    f32  scratch: sparse B-spline weight matrix
    """
    # W depends only on the batch tile (grid axis 0); build it once at the
    # first D tile and reuse it for every D slab of this batch tile.
    @pl.when(pl.program_id(1) == 0)
    def _():
        tb, ncp = w_ref.shape

        m = t_ref[...] * jnp.float32(inv_dt) + 1.0          # (TB, 1)
        idx_f = jnp.floor(m)
        f = m - idx_f                                        # fractional part
        # Clamp the 4-point window inside the table. Pallas VMEM access has no
        # bounds check (PyTorch advanced indexing would raise on OOB times).
        idx = jnp.clip(idx_f.astype(jnp.int32), 1, nc_valid - 3)

        f2 = f * f
        f3 = f2 * f
        sixth = jnp.float32(1.0 / 6.0)
        # [w0..w3] = [1, f, f^2, f^3] @ H   (cubic B-spline basis weights)
        w0 = sixth * (1.0 - 3.0 * f + 3.0 * f2 - f3)
        w1 = sixth * (4.0 - 6.0 * f2 + 3.0 * f3)
        w2 = sixth * (1.0 + 3.0 * f + 3.0 * f2 - 3.0 * f3)
        w3 = sixth * f3

        cols = jax.lax.broadcasted_iota(jnp.int32, (tb, ncp), 1)   # (TB, NCP)
        off = cols - (idx - 1)                                     # (TB, NCP)
        # Nested select chain: 4 selects/element, minimal temporaries.
        w_ref[...] = jnp.where(
            off == 0, w0,
            jnp.where(off == 1, w1,
                      jnp.where(off == 2, w2,
                                jnp.where(off == 3, w3, jnp.float32(0.0)))))

    # One MXU pass per tile: (TB, NCP) x (NCP, TD) -> (TB, TD).
    # Precision pinned so f32 operands are not demoted to bf16 on the MXU.
    # (Optional: cast W/grid to bf16 here for v6e/v7x if ~1e-3 error is OK.)
    out_ref[...] = jnp.dot(w_ref[...], grid_ref[...],
                           preferred_element_type=jnp.float32,
                           precision=jax.lax.Precision.HIGHEST)


def temporal_bspline_forward(t, grid, *, nt, grid_spacing_in_time_points,
                             tile_b=512, tile_d=512, core_parallel=False):
    """JAX/Pallas equivalent of temporal_bspline(nt, spacing).forward(t, grid).

    t: (B,) query times; grid: (nc, D) control points. Returns (B, D) f32.
    `core_parallel=True` uses explicit per-TensorCore sharding of the batch
    axis (the real 2x lever on v7x); default keeps plain "parallel" semantics.
    """
    dt = grid_spacing_in_time_points * 1.0 / (nt - 1)
    t = jnp.asarray(t, jnp.float32).reshape(-1, 1)
    B = t.shape[0]
    nc, D = grid.shape

    # ---- tiling geometry ----------------------------------------------------
    tb = _round_up(min(tile_b, max(B, 8)), 8)      # batch tile (sublane mult.)
    b_pad = _round_up(B, tb)
    nc_pad = _round_up(nc, 8)
    d_pad = _round_up(D, 128)                      # lane-dense output stores
    td = min(_round_up(min(tile_d, d_pad), 128), d_pad)

    t_p = jnp.pad(t, ((0, b_pad - B), (0, 0)))
    grid_p = jnp.pad(grid.astype(jnp.float32),
                     ((0, nc_pad - nc), (0, d_pad - D)))

    n_b = b_pad // tb
    n_d = d_pad // td

    if core_parallel:
        # Explicit TensorCore sharding of the batch-tile axis (v7x: 2 TCs).
        dim_sems = (pltpu.CORE_PARALLEL, pltpu.ARBITRARY)
    else:
        # D axis is "arbitrary": W scratch is initialized at j==0 and reused.
        dim_sems = ("parallel", "arbitrary")

    kernel = functools.partial(_bspline_kernel, inv_dt=1.0 / dt, nc_valid=nc)

    out = pl.pallas_call(
        kernel,
        out_shape=jax.ShapeDtypeStruct((b_pad, d_pad), jnp.float32),
        grid_spec=pltpu.PrefetchScalarGridSpec(
            num_scalar_prefetch=0,
            grid=(n_b, n_d),
            in_specs=[
                pl.BlockSpec((tb, 1), lambda i, j: (i, 0)),        # raw times
                pl.BlockSpec((nc_pad, td), lambda i, j: (0, j)),   # table slab
            ],
            out_specs=pl.BlockSpec((tb, td), lambda i, j: (i, j)),
            scratch_shapes=[pltpu.VMEM((tb, nc_pad), jnp.float32)],
        ),
        compiler_params=pltpu.CompilerParams(dimension_semantics=dim_sems),
    )(t_p, grid_p)

    return out[:B, :D]


def _reference_forward(t, grid, *, nt, grid_spacing_in_time_points):
    """Pure-JAX transcription of the PyTorch forward, for verification."""
    dt = grid_spacing_in_time_points * 1.0 / (nt - 1)
    helper = (1.0 / 6.0) * jnp.array(
        [[1, 4, 1, 0], [-3, 0, 3, 0], [3, -6, 3, 0], [-1, 3, -3, 1]],
        jnp.float32)
    m = (jnp.asarray(t, jnp.float32) / dt + 1.0).reshape(-1, 1)
    idx = jnp.floor(m).astype(jnp.int32)
    f = m - idx.astype(jnp.float32)
    rows = jnp.concatenate([idx - 1, idx, idx + 1, idx + 2], axis=-1)  # (B, 4)
    gathered = grid[rows, :]                                           # (B,4,D)
    h = jnp.einsum('ij,bjd->bid', helper, gathered)                    # (B,4,D)
    return h[:, 0] + f * h[:, 1] + f ** 2 * h[:, 2] + f ** 3 * h[:, 3]


if __name__ == "__main__":
    nt = 17
    grid_spacing_in_time_points = 2
    nc = int((nt - 1) / grid_spacing_in_time_points) + 4   # 12 control points
    D = 128                                                # feature dim (lanes)
    B = 8                                                  # number of query times

    key = jax.random.PRNGKey(0)
    k_t, k_g = jax.random.split(key)
    # times in [0, 1) so the 4-point window stays inside the control grid
    t = jax.random.uniform(k_t, (B,), jnp.float32, minval=0.0, maxval=0.999)
    grid = jax.random.normal(k_g, (nc, D), jnp.float32)

    out = temporal_bspline_forward(
        t, grid, nt=nt, grid_spacing_in_time_points=grid_spacing_in_time_points)
    out = jax.block_until_ready(out)

    ref = _reference_forward(
        t, grid, nt=nt, grid_spacing_in_time_points=grid_spacing_in_time_points)

    assert out.shape == (B, D)
    assert jnp.allclose(out, ref, rtol=1e-5, atol=1e-5), "mismatch vs reference"
    print("KERNEL_OK")
</pallas_src>

<mosaic_0001>
module attributes {stable_mosaic.version = 11 : i64} {
  func.func @_bspline_kernel(%arg0: i32, %arg1: i32, %arg2: memref<8x1xf32, #tpu.memory_space<vmem>>, %arg3: memref<16x128xf32, #tpu.memory_space<vmem>>, %arg4: memref<8x128xf32, #tpu.memory_space<vmem>>, %arg5: memref<8x16xf32, #tpu.memory_space<vmem>>) attributes {dimension_semantics = [#tpu.dimension_semantics<parallel>, #tpu.dimension_semantics<arbitrary>], iteration_bounds = array<i64: 1, 1>, scalar_prefetch = 0 : i64, scratch_operands = 1 : i64, tpu.core_type = #tpu.core_type<tc>, window_params = [{transform_indices = @transform_0, window_bounds = array<i64: 8, 1>}, {transform_indices = @transform_1, window_bounds = array<i64: 16, 128>}, {transform_indices = @transform_2, window_bounds = array<i64: 8, 128>}]} {
    %c0_i32 = arith.constant 0 : i32
    %0 = arith.cmpi eq, %arg1, %c0_i32 : i32
    %1 = arith.extui %0 : i1 to i32
    %c0_i32_0 = arith.constant 0 : i32
    %2 = arith.cmpi ne, %1, %c0_i32_0 : i32
    scf.if %2 {
      %c0_6 = arith.constant 0 : index
      %c0_7 = arith.constant 0 : index
      %7 = vector.load %arg2[%c0_6, %c0_7] : memref<8x1xf32, #tpu.memory_space<vmem>>, vector<8x1xf32>
      %cst_8 = arith.constant 8.000000e+00 : f32
      %8 = vector.broadcast %cst_8 : f32 to vector<8x1xf32>
      %9 = arith.mulf %7, %8 : vector<8x1xf32>
      %cst_9 = arith.constant 1.000000e+00 : f32
      %10 = vector.broadcast %cst_9 : f32 to vector<8x1xf32>
      %11 = arith.addf %9, %10 : vector<8x1xf32>
      %12 = math.floor %11 : vector<8x1xf32>
      %13 = arith.subf %11, %12 : vector<8x1xf32>
      %14 = arith.fptosi %12 : vector<8x1xf32> to vector<8x1xi32>
      %c1_i32 = arith.constant 1 : i32
      %c9_i32 = arith.constant 9 : i32
      %15 = vector.broadcast %c1_i32 : i32 to vector<8x1xi32>
      %16 = arith.maxsi %15, %14 : vector<8x1xi32>
      %17 = vector.broadcast %c9_i32 : i32 to vector<8x1xi32>
      %18 = arith.minsi %17, %16 : vector<8x1xi32>
      %19 = arith.mulf %13, %13 : vector<8x1xf32>
      %20 = arith.mulf %19, %13 : vector<8x1xf32>
      %cst_10 = arith.constant 3.000000e+00 : f32
      %21 = vector.broadcast %cst_10 : f32 to vector<8x1xf32>
      %22 = arith.mulf %21, %13 : vector<8x1xf32>
      %cst_11 = arith.constant 1.000000e+00 : f32
      %23 = vector.broadcast %cst_11 : f32 to vector<8x1xf32>
      %24 = arith.subf %23, %22 : vector<8x1xf32>
      %cst_12 = arith.constant 3.000000e+00 : f32
      %25 = vector.broadcast %cst_12 : f32 to vector<8x1xf32>
      %26 = arith.mulf %25, %19 : vector<8x1xf32>
      %27 = arith.addf %24, %26 : vector<8x1xf32>
      %28 = arith.subf %27, %20 : vector<8x1xf32>
      %cst_13 = arith.constant 0.166666672 : f32
      %29 = vector.broadcast %cst_13 : f32 to vector<8x1xf32>
      %30 = arith.mulf %29, %28 : vector<8x1xf32>
      %cst_14 = arith.constant 6.000000e+00 : f32
      %31 = vector.broadcast %cst_14 : f32 to vector<8x1xf32>
      %32 = arith.mulf %31, %19 : vector<8x1xf32>
      %cst_15 = arith.constant 4.000000e+00 : f32
      %33 = vector.broadcast %cst_15 : f32 to vector<8x1xf32>
      %34 = arith.subf %33, %32 : vector<8x1xf32>
      %cst_16 = arith.constant 3.000000e+00 : f32
      %35 = vector.broadcast %cst_16 : f32 to vector<8x1xf32>
      %36 = arith.mulf %35, %20 : vector<8x1xf32>
      %37 = arith.addf %34, %36 : vector<8x1xf32>
      %cst_17 = arith.constant 0.166666672 : f32
      %38 = vector.broadcast %cst_17 : f32 to vector<8x1xf32>
      %39 = arith.mulf %38, %37 : vector<8x1xf32>
      %cst_18 = arith.constant 3.000000e+00 : f32
      %40 = vector.broadcast %cst_18 : f32 to vector<8x1xf32>
      %41 = arith.mulf %40, %13 : vector<8x1xf32>
      %cst_19 = arith.constant 1.000000e+00 : f32
      %42 = vector.broadcast %cst_19 : f32 to vector<8x1xf32>
      %43 = arith.addf %42, %41 : vector<8x1xf32>
      %cst_20 = arith.constant 3.000000e+00 : f32
      %44 = vector.broadcast %cst_20 : f32 to vector<8x1xf32>
      %45 = arith.mulf %44, %19 : vector<8x1xf32>
      %46 = arith.addf %43, %45 : vector<8x1xf32>
      %cst_21 = arith.constant 3.000000e+00 : f32
      %47 = vector.broadcast %cst_21 : f32 to vector<8x1xf32>
      %48 = arith.mulf %47, %20 : vector<8x1xf32>
      %49 = arith.subf %46, %48 : vector<8x1xf32>
      %cst_22 = arith.constant 0.166666672 : f32
      %50 = vector.broadcast %cst_22 : f32 to vector<8x1xf32>
      %51 = arith.mulf %50, %49 : vector<8x1xf32>
      %cst_23 = arith.constant 0.166666672 : f32
      %52 = vector.broadcast %cst_23 : f32 to vector<8x1xf32>
      %53 = arith.mulf %52, %20 : vector<8x1xf32>
      %54 = tpu.iota {dimensions = array<i32: 1>} : vector<8x16xi32>
      %c1_i32_24 = arith.constant 1 : i32
      %55 = vector.broadcast %c1_i32_24 : i32 to vector<8x1xi32>
      %56 = arith.subi %18, %55 : vector<8x1xi32>
      %57 = vector.broadcast %56 : vector<8x1xi32> to vector<8x16xi32>
      %58 = arith.subi %54, %57 : vector<8x16xi32>
      %c0_i32_25 = arith.constant 0 : i32
      %59 = vector.broadcast %c0_i32_25 : i32 to vector<8x16xi32>
      %60 = arith.cmpi eq, %58, %59 : vector<8x16xi32>
      %c1_i32_26 = arith.constant 1 : i32
      %61 = vector.broadcast %c1_i32_26 : i32 to vector<8x16xi32>
      %62 = arith.cmpi eq, %58, %61 : vector<8x16xi32>
      %c2_i32 = arith.constant 2 : i32
      %63 = vector.broadcast %c2_i32 : i32 to vector<8x16xi32>
      %64 = arith.cmpi eq, %58, %63 : vector<8x16xi32>
      %c3_i32 = arith.constant 3 : i32
      %65 = vector.broadcast %c3_i32 : i32 to vector<8x16xi32>
      %66 = arith.cmpi eq, %58, %65 : vector<8x16xi32>
      %cst_27 = arith.constant 0.000000e+00 : f32
      %67 = vector.shape_cast %53 : vector<8x1xf32> to vector<8x1xf32>
      %68 = vector.broadcast %67 : vector<8x1xf32> to vector<8x16xf32>
      %69 = vector.broadcast %cst_27 : f32 to vector<8x16xf32>
      %70 = arith.select %66, %68, %69 : vector<8x16xi1>, vector<8x16xf32>
      %71 = vector.shape_cast %51 : vector<8x1xf32> to vector<8x1xf32>
      %72 = vector.broadcast %71 : vector<8x1xf32> to vector<8x16xf32>
      %73 = arith.select %64, %72, %70 : vector<8x16xi1>, vector<8x16xf32>
      %74 = vector.shape_cast %39 : vector<8x1xf32> to vector<8x1xf32>
      %75 = vector.broadcast %74 : vector<8x1xf32> to vector<8x16xf32>
      %76 = arith.select %62, %75, %73 : vector<8x16xi1>, vector<8x16xf32>
      %77 = vector.shape_cast %30 : vector<8x1xf32> to vector<8x1xf32>
      %78 = vector.broadcast %77 : vector<8x1xf32> to vector<8x16xf32>
      %79 = arith.select %60, %78, %76 : vector<8x16xi1>, vector<8x16xf32>
      %c0_28 = arith.constant 0 : index
      %c0_29 = arith.constant 0 : index
      %80 = vector.load %arg5[%c0_28, %c0_29] : memref<8x16xf32, #tpu.memory_space<vmem>>, vector<8x16xf32>
      tpu.vector_store %arg5[%c0_28, %c0_29], %79 {strides = array<i32>} : memref<8x16xf32, #tpu.memory_space<vmem>>, vector<8x16xf32>,
    } else {
    }
    %c0 = arith.constant 0 : index
    %c0_1 = arith.constant 0 : index
    %3 = vector.load %arg5[%c0, %c0_1] : memref<8x16xf32, #tpu.memory_space<vmem>>, vector<8x16xf32>
    %c0_2 = arith.constant 0 : index
    %c0_3 = arith.constant 0 : index
    %4 = vector.load %arg3[%c0_2, %c0_3] : memref<16x128xf32, #tpu.memory_space<vmem>>, vector<16x128xf32>
    %cst = arith.constant dense<0.000000e+00> : vector<8x128xf32>
    %5 = tpu.matmul %3, %4, %cst {dimension_numbers = #tpu.dot_dimension_numbers<[1], [0], [0], [1], [0, 0, 1, 1], [], []>, precision = #tpu.contract_precision<fp32>} : vector<8x16xf32>, vector<16x128xf32>, vector<8x128xf32> -> vector<8x128xf32>
    %c0_4 = arith.constant 0 : index
    %c0_5 = arith.constant 0 : index
    %6 = vector.load %arg4[%c0_4, %c0_5] : memref<8x128xf32, #tpu.memory_space<vmem>>, vector<8x128xf32>
    tpu.vector_store %arg4[%c0_4, %c0_5], %5 {strides = array<i32>} : memref<8x128xf32, #tpu.memory_space<vmem>>, vector<8x128xf32>,
    return
  }
  func.func @transform_0(%arg0: i32, %arg1: i32) -> (i32, i32) {
    %c0_i32 = arith.constant 0 : i32
    %c0_i32_0 = arith.constant 0 : i32
    return %arg0, %c0_i32 : i32, i32
  }
  func.func @transform_1(%arg0: i32, %arg1: i32) -> (i32, i32) {
    %c0_i32 = arith.constant 0 : i32
    %c0_i32_0 = arith.constant 0 : i32
    return %c0_i32, %arg1 : i32, i32
  }
  func.func @transform_2(%arg0: i32, %arg1: i32) -> (i32, i32) {
    %c0_i32 = arith.constant 0 : i32
    return %arg0, %arg1 : i32, i32
  }
}

</mosaic_0001>

<llo_original>
// kernel: tpu_custom_call.1
$region0: #{tpu_custom_call.1}
  #allocation0 [shape = 'u32[]', space=smem, size = 0x4, offset = 0x4, fixed_abs, tag = 'smem constant byte address 0x4 - core index']
  #allocation1 [shape = 'u32[144,128]{1,0:T(1,128)}', space=vmem, size = 0x12000, scoped, tag = 'internal scratch']
  #allocation2 [shape = 'f32[8,16]{1,0:T(8,128)}', space=vmem, size = 0x1000, scoped, tag = 'scratch operand']
  %s0 = inlined_call_operand.vmem [shape: f32[8,1], index: 0, kind: input, shape index: {}]
  %s1 = inlined_call_operand.hbm [shape: f32[16,128], index: 1, kind: input, shape index: {}]
  %s2 = inlined_call_operand.hbm [shape: f32[8,128], index: 2, kind: output, shape index: {}]
  %s3 = sld [smem:[#allocation0]]
  $region26: #{tpu_custom_call.1} parent=0
    _
  %s5 = ssub.s32 1, %s3
  %s6 = scalar_select 0, %s5, %s3
  $region1: #{tpu_custom_call.1} parent=0
    #allocation3 [shape = 'u8[8192]{0}', space=vmem, size = 0x2000, scoped, tag = 'input window, operand 1, single buffered']
    #allocation4 [shape = 's32[1]{0}', space=sflag, size = 0x4, scoped, tag = 'scoped memory for tpu_custom_call.1']
    #allocation5 [shape = 's32[1]{0}', space=sflag, size = 0x4, scoped, tag = 'scoped memory for tpu_custom_call.1']
    #allocation6 [shape = 'u8[4096]{0}', space=vmem, size = 0x1000, scoped, tag = 'output window, operand 0, single buffered']
    %7 = vsyncpa [#allocation4], 0
    %8 = vsyncpa [#allocation5], 0
    // Predicated region
    $region2: #{tpu_custom_call.1} parent=1 // pred_check
      _
    $region3: #{tpu_custom_call.1} parent=1 // pred_check_branch
      %10 = sbr.rel (0) target = $region5
    $region4: #{tpu_custom_call.1} parent=1 // pred_region
      _
    $region5: #{tpu_custom_call.1} parent=1 // pred_fallthru
      _
    // Predicated region
    $region6: #{tpu_custom_call.1} parent=1 // pred_check
      _
    $region7: #{tpu_custom_call.1} parent=1 // pred_check_branch
      %12 = sbr.rel (0) target = $region9
    $region8: #{tpu_custom_call.1} parent=1 // pred_region
      %s14 = ssub.s32 256, 256
      %15 = vsyncadd [#allocation4], %s14
      %s16 = sshll.u32 [#allocation3], 4
      %s17 = int_to_ptr.vmem [resolvable:$true] %s16
      %22 = dma.hbm_to_vmem [thread:$0]  %s1, 256, %s17, [#allocation4], 128, 128, 8
    $region9: #{tpu_custom_call.1} parent=1 // pred_fallthru
      _
    // Predicated region
    $region10: #{tpu_custom_call.1} parent=1 // pred_check
      _
    $region11: #{tpu_custom_call.1} parent=1 // pred_check_branch
      %24 = sbr.rel (0) target = $region13
    $region12: #{tpu_custom_call.1} parent=1 // pred_region
      %25 = dma.done [#allocation4], 256
    $region13: #{tpu_custom_call.1} parent=1 // pred_fallthru
      _
    %p26 = scmp.eq.s32.totalorder 0, 0
    // Predicated region
    $region14: #{tpu_custom_call.1} parent=1 // pred_check
      %p27 = pneg %p26
    $region15: #{tpu_custom_call.1} parent=1 // pred_check_branch
      %29 = sbr.rel (%p27) target = $region17
    $region16: #{tpu_custom_call.1} parent=1 // pred_region
      %v30 = vld [vmem:[%s0] sm:$0xff]
      %v31 = vmul.f32 %v30, 8.0
      %v32 = vadd.f32 %v31, 1.0
      %v33 = vfloor.f32 %v32
      %v34 = vsub.f32 %v32, %v33
      %v35 = vcvt.f32.s32.to.zero.pseudo %v33
      %vm36 = vcmp.gt.s32.totalorder %v35, 1
      %v37 = vsel %vm36, %v35, 1
      %vm38 = vcmp.lt.s32.totalorder %v37, 9
      %v39 = vsel %vm38, %v37, 9
      %v40 = vmul.f32 %v34, %v34
      %v41 = vmul.f32 %v40, %v34
      %v42 = vmul.f32 %v34, 3.0
      %v43 = vsub.f32 1.0, %v42
      %v44 = vmul.f32 %v40, 3.0
      %v45 = vadd.f32 %v43, %v44
      %v46 = vsub.f32 %v45, %v41
      %v47 = vmul.f32 %v46, 0.16666667
      %v48 = vmul.f32 %v40, 6.0
      %v49 = vsub.f32 4.0, %v48
      %v50 = vmul.f32 %v41, 3.0
      %v51 = vadd.f32 %v49, %v50
      %v52 = vmul.f32 %v51, 0.16666667
      %v53 = vadd.f32 %v42, 1.0
      %v54 = vadd.f32 %v53, %v44
      %v55 = vsub.f32 %v54, %v50
      %v56 = vmul.f32 %v55, 0.16666667
      %v57 = vmul.f32 %v41, 0.16666667
      %v58 = vlaneseq
      %v59 = vand.u32 %v58, 127
      %v60 = vsub.s32 %v39, 1
      %61 = vset.pattern.permute.xlu0 0
      %62 = vperm.xlu0 %61, %v60
      %v63 = vpop.permute.xlu0 %62
      %v64 = vsub.s32 %v59, %v63
      %vm65 = vcmp.eq.s32.totalorder %v64, 0
      %vm66 = vcmp.eq.s32.totalorder %v64, 1
      %vm67 = vcmp.eq.s32.totalorder %v64, 2
      %vm68 = vcmp.eq.s32.totalorder %v64, 3
      %70 = vset.pattern.permute.xlu0 0
      %71 = vperm.xlu0 %70, %v57
      %v72 = vpop.permute.xlu0 %71
      %v74 = vsel %vm68, %v72, 0.0
      %76 = vset.pattern.permute.xlu0 0
      %77 = vperm.xlu0 %76, %v56
      %v78 = vpop.permute.xlu0 %77
      %v80 = vsel %vm67, %v78, %v74
      %82 = vset.pattern.permute.xlu0 0
      %83 = vperm.xlu0 %82, %v52
      %v84 = vpop.permute.xlu0 %83
      %v86 = vsel %vm66, %v84, %v80
      %88 = vset.pattern.permute.xlu0 0
      %89 = vperm.xlu0 %88, %v47
      %v90 = vpop.permute.xlu0 %89
      %v92 = vsel %vm65, %v90, %v86
      %vm93 = vcmask 130048
      %94 = vst.msk [vmem:[#allocation2] sm:$0xff] %vm93, %v92
    $region17: #{tpu_custom_call.1} parent=1 // pred_fallthru
      _
    %v95 = vld [vmem:[#allocation2] sm:$0xff]
    %v96 = vld [vmem:[#allocation3] sm:$0xff]
    %v97 = vld [vmem:[#allocation3 + $0x8] sm:$0xff]
    %vm98 = vcmask 130048
    %v100 = vsel %vm98, %v95, 0
    %102 = vmatprep.subr.mxu0 0.0
    %v103 = vand.u32 %v96, 4294901760
    %104 = vmatpush1.msra.mxu0 %v103
    %105 = vmatprep.subr.mxu0 0.0
    %v106 = vand.u32 %v97, 4294901760
    %107 = vmatpush1.msra.mxu0 %v106
    %108 = vmatprep.subr.mxu0 0.0
    %109 = vmatpush1.msra.mxu0 0.0
    %110 = vmatprep.subr.mxu0 0.0
    %111 = vmatpush1.msra.mxu0 0.0
    %112 = vmatprep.subr.mxu0 0.0
    %113 = vmatpush1.msra.mxu0 0.0
    %114 = vmatprep.subr.mxu0 0.0
    %115 = vmatpush1.msra.mxu0 0.0
    %116 = vmatprep.subr.mxu0 0.0
    %117 = vmatpush1.msra.mxu0 0.0
    %118 = vmatprep.subr.mxu0 0.0
    %119 = vmatpush1.msra.mxu0 0.0
    %120 = vmatprep.subr.mxu0 0.0
    %121 = vmatpush1.msra.mxu0 0.0
    %122 = vmatprep.subr.mxu0 0.0
    %123 = vmatpush1.msra.mxu0 0.0
    %124 = vmatprep.subr.mxu0 0.0
    %125 = vmatpush1.msra.mxu0 0.0
    %126 = vmatprep.subr.mxu0 0.0
    %127 = vmatpush1.msra.mxu0 0.0
    %128 = vmatprep.subr.mxu0 0.0
    %129 = vmatpush1.msra.mxu0 0.0
    %130 = vmatprep.subr.mxu0 0.0
    %131 = vmatpush1.msra.mxu0 0.0
    %132 = vmatprep.subr.mxu0 0.0
    %133 = vmatpush1.msra.mxu0 0.0
    %134 = vmatprep.subr.mxu0 0.0
    %135 = vmatpush1.msra.mxu0 0.0
    %136 = vmatprep.subr.mxu0 0.0
    %137 = vmatpush1.msra.mxu0 0.0
    %138 = vmatprep.subr.mxu0 0.0
    %139 = vmatpush1.msra.mxu0 0.0
    %140 = vmatprep.subr.mxu0 0.0
    %141 = vmatpush1.msra.mxu0 0.0
    %142 = vmatprep.subr.mxu0 0.0
    %143 = vmatpush1.msra.mxu0 0.0
    %144 = vmatprep.subr.mxu0 0.0
    %145 = vmatpush1.msra.mxu0 0.0
    %146 = vmatprep.subr.mxu0 0.0
    %147 = vmatpush1.msra.mxu0 0.0
    %148 = vmatprep.subr.mxu0 0.0
    %149 = vmatpush1.msra.mxu0 0.0
    %150 = vmatprep.subr.mxu0 0.0
    %151 = vmatpush1.msra.mxu0 0.0
    %152 = vmatprep.subr.mxu0 0.0
    %153 = vmatpush1.msra.mxu0 0.0
    %154 = vmatprep.subr.mxu0 0.0
    %155 = vmatpush1.msra.mxu0 0.0
    %156 = vmatprep.subr.mxu0 0.0
    %157 = vmatpush1.msra.mxu0 0.0
    %158 = vmatprep.subr.mxu0 0.0
    %159 = vmatpush1.msra.mxu0 0.0
    %160 = vmatprep.subr.mxu0 0.0
    %161 = vmatpush1.msra.mxu0 0.0
    %162 = vmatprep.subr.mxu0 0.0
    %163 = vmatpush1.msra.mxu0 0.0
    %164 = vmatprep.subr.mxu0 0.0
    %165 = vmatpush1.msra.mxu0 0.0
    %166 = vmatprep.subr.mxu0 0.0
    %167 = vmatpush1.msra.mxu0 0.0
    %168 = vmatprep.mubr.f32.mxu0 0.0
    %v169 = vand.u32 %v100, 4294901760
    %v170 = vsub.f32 %v100, %v169
    %v171 = vand.u32 %v170, 4294901760
    %v172 = vsub.f32 %v170, %v171
    %v173 = vand.u32 %v172, 4294901760
    %174 = vmatmul.mubr.f32.gmra.mrb[0].mxu0 %v173
    %v175 = vpop.f32.mrb[0].mxu0
    %v176 = vadd.f32 0.0, %v175
    %v177 = vpop.f32.mrb[0].mxu0
    %178 = vdwg.mxu0
    %179 = vmatprep.subr.mxu0 0.0
    %v180 = vand.u32 %v96, 4294901760
    %v181 = vsub.f32 %v96, %v180
    %v182 = vand.u32 %v181, 4294901760
    %v183 = vsub.f32 %v181, %v182
    %v184 = vand.u32 %v183, 4294901760
    %185 = vmatpush1.msra.mxu0 %v184
    %186 = vmatprep.subr.mxu0 0.0
    %v187 = vand.u32 %v97, 4294901760
    %v188 = vsub.f32 %v97, %v187
    %v189 = vand.u32 %v188, 4294901760
    %v190 = vsub.f32 %v188, %v189
    %v191 = vand.u32 %v190, 4294901760
    %192 = vmatpush1.msra.mxu0 %v191
    %193 = vmatprep.subr.mxu0 0.0
    %194 = vmatpush1.msra.mxu0 0.0
    %195 = vmatprep.subr.mxu0 0.0
    %196 = vmatpush1.msra.mxu0 0.0
    %197 = vmatprep.subr.mxu0 0.0
    %198 = vmatpush1.msra.mxu0 0.0
    %199 = vmatprep.subr.mxu0 0.0
    %200 = vmatpush1.msra.mxu0 0.0
    %201 = vmatprep.subr.mxu0 0.0
    %202 = vmatpush1.msra.mxu0 0.0
    %203 = vmatprep.subr.mxu0 0.0
    %204 = vmatpush1.msra.mxu0 0.0
    %205 = vmatprep.subr.mxu0 0.0
    %206 = vmatpush1.msra.mxu0 0.0
    %207 = vmatprep.subr.mxu0 0.0
    %208 = vmatpush1.msra.mxu0 0.0
    %209 = vmatprep.subr.mxu0 0.0
    %210 = vmatpush1.msra.mxu0 0.0
    %211 = vmatprep.subr.mxu0 0.0
    %212 = vmatpush1.msra.mxu0 0.0
    %213 = vmatprep.subr.mxu0 0.0
    %214 = vmatpush1.msra.mxu0 0.0
    %215 = vmatprep.subr.mxu0 0.0
    %216 = vmatpush1.msra.mxu0 0.0
    %217 = vmatprep.subr.mxu0 0.0
    %218 = vmatpush1.msra.mxu0 0.0
    %219 = vmatprep.subr.mxu0 0.0
    %220 = vmatpush1.msra.mxu0 0.0
    %221 = vmatprep.subr.mxu0 0.0
    %222 = vmatpush1.msra.mxu0 0.0
    %223 = vmatprep.subr.mxu0 0.0
    %224 = vmatpush1.msra.mxu0 0.0
    %225 = vmatprep.subr.mxu0 0.0
    %226 = vmatpush1.msra.mxu0 0.0
    %227 = vmatprep.subr.mxu0 0.0
    %228 = vmatpush1.msra.mxu0 0.0
    %229 = vmatprep.subr.mxu0 0.0
    %230 = vmatpush1.msra.mxu0 0.0
    %231 = vmatprep.subr.mxu0 0.0
    %232 = vmatpush1.msra.mxu0 0.0
    %233 = vmatprep.subr.mxu0 0.0
    %234 = vmatpush1.msra.mxu0 0.0
    %235 = vmatprep.subr.mxu0 0.0
    %236 = vmatpush1.msra.mxu0 0.0
    %237 = vmatprep.subr.mxu0 0.0
    %238 = vmatpush1.msra.mxu0 0.0
    %239 = vmatprep.subr.mxu0 0.0
    %240 = vmatpush1.msra.mxu0 0.0
    %241 = vmatprep.subr.mxu0 0.0
    %242 = vmatpush1.msra.mxu0 0.0
    %243 = vmatprep.subr.mxu0 0.0
    %244 = vmatpush1.msra.mxu0 0.0
    %245 = vmatprep.subr.mxu0 0.0
    %246 = vmatpush1.msra.mxu0 0.0
    %247 = vmatprep.subr.mxu0 0.0
    %248 = vmatpush1.msra.mxu0 0.0
    %249 = vmatprep.subr.mxu0 0.0
    %250 = vmatpush1.msra.mxu0 0.0
    %251 = vmatprep.subr.mxu0 0.0
    %252 = vmatpush1.msra.mxu0 0.0
    %253 = vmatprep.mubr.f32.mxu0 0.0
    %v254 = vand.u32 %v100, 4294901760
    %255 = vmatmul.mubr.f32.gmra.mrb[0].mxu0 %v254
    %v256 = vpop.f32.mrb[0].mxu0
    %v257 = vadd.f32 %v176, %v256
    %v258 = vpop.f32.mrb[0].mxu0
    %259 = vdwg.mxu0
    %260 = vmatprep.subr.mxu0 0.0
    %v261 = vand.u32 %v96, 4294901760
    %v262 = vsub.f32 %v96, %v261
    %263 = vmatpush1.msra.mxu0 %v262
    %264 = vmatprep.subr.mxu0 0.0
    %v265 = vand.u32 %v97, 4294901760
    %v266 = vsub.f32 %v97, %v265
    %267 = vmatpush1.msra.mxu0 %v266
    %268 = vmatprep.subr.mxu0 0.0
    %269 = vmatpush1.msra.mxu0 0.0
    %270 = vmatprep.subr.mxu0 0.0
    %271 = vmatpush1.msra.mxu0 0.0
    %272 = vmatprep.subr.mxu0 0.0
    %273 = vmatpush1.msra.mxu0 0.0
    %274 = vmatprep.subr.mxu0 0.0
    %275 = vmatpush1.msra.mxu0 0.0
    %276 = vmatprep.subr.mxu0 0.0
    %277 = vmatpush1.msra.mxu0 0.0
    %278 = vmatprep.subr.mxu0 0.0
    %279 = vmatpush1.msra.mxu0 0.0
    %280 = vmatprep.subr.mxu0 0.0
    %281 = vmatpush1.msra.mxu0 0.0
    %282 = vmatprep.subr.mxu0 0.0
    %283 = vmatpush1.msra.mxu0 0.0
    %284 = vmatprep.subr.mxu0 0.0
    %285 = vmatpush1.msra.mxu0 0.0
    %286 = vmatprep.subr.mxu0 0.0
    %287 = vmatpush1.msra.mxu0 0.0
    %288 = vmatprep.subr.mxu0 0.0
    %289 = vmatpush1.msra.mxu0 0.0
    %290 = vmatprep.subr.mxu0 0.0
    %291 = vmatpush1.msra.mxu0 0.0
    %292 = vmatprep.subr.mxu0 0.0
    %293 = vmatpush1.msra.mxu0 0.0
    %294 = vmatprep.subr.mxu0 0.0
    %295 = vmatpush1.msra.mxu0 0.0
    %296 = vmatprep.subr.mxu0 0.0
    %297 = vmatpush1.msra.mxu0 0.0
    %298 = vmatprep.subr.mxu0 0.0
    %299 = vmatpush1.msra.mxu0 0.0
    %300 = vmatprep.subr.mxu0 0.0
    %301 = vmatpush1.msra.mxu0 0.0
    %302 = vmatprep.subr.mxu0 0.0
    %303 = vmatpush1.msra.mxu0 0.0
    %304 = vmatprep.subr.mxu0 0.0
    %305 = vmatpush1.msra.mxu0 0.0
    %306 = vmatprep.subr.mxu0 0.0
    %307 = vmatpush1.msra.mxu0 0.0
    %308 = vmatprep.subr.mxu0 0.0
    %309 = vmatpush1.msra.mxu0 0.0
    %310 = vmatprep.subr.mxu0 0.0
    %311 = vmatpush1.msra.mxu0 0.0
    %312 = vmatprep.subr.mxu0 0.0
    %313 = vmatpush1.msra.mxu0 0.0
    %314 = vmatprep.subr.mxu0 0.0
    %315 = vmatpush1.msra.mxu0 0.0
    %316 = vmatprep.subr.mxu0 0.0
    %317 = vmatpush1.msra.mxu0 0.0
    %318 = vmatprep.subr.mxu0 0.0
    %319 = vmatpush1.msra.mxu0 0.0
    %320 = vmatprep.subr.mxu0 0.0
    %321 = vmatpush1.msra.mxu0 0.0
    %322 = vmatprep.subr.mxu0 0.0
    %323 = vmatpush1.msra.mxu0 0.0
    %324 = vmatprep.subr.mxu0 0.0
    %325 = vmatpush1.msra.mxu0 0.0
    %326 = vmatprep.subr.mxu0 0.0
    %327 = vmatpush1.msra.mxu0 0.0
    %328 = vmatprep.mubr.f32.mxu0 0.0
    %v329 = vand.u32 %v100, 4294901760
    %v330 = vsub.f32 %v100, %v329
    %331 = vmatmul.mubr.f32.gmra.mrb[0].mxu0 %v330
    %v332 = vpop.f32.mrb[0].mxu0
    %v333 = vadd.f32 %v257, %v332
    %v334 = vpop.f32.mrb[0].mxu0
    %335 = vdwg.mxu0
    %336 = vmatprep.subr.mxu0 0.0
    %v337 = vand.u32 %v96, 4294901760
    %338 = vmatpush1.msra.mxu0 %v337
    %339 = vmatprep.subr.mxu0 0.0
    %v340 = vand.u32 %v97, 4294901760
    %341 = vmatpush1.msra.mxu0 %v340
    %342 = vmatprep.subr.mxu0 0.0
    %343 = vmatpush1.msra.mxu0 0.0
    %344 = vmatprep.subr.mxu0 0.0
    %345 = vmatpush1.msra.mxu0 0.0
    %346 = vmatprep.subr.mxu0 0.0
    %347 = vmatpush1.msra.mxu0 0.0
    %348 = vmatprep.subr.mxu0 0.0
    %349 = vmatpush1.msra.mxu0 0.0
    %350 = vmatprep.subr.mxu0 0.0
    %351 = vmatpush1.msra.mxu0 0.0
    %352 = vmatprep.subr.mxu0 0.0
    %353 = vmatpush1.msra.mxu0 0.0
    %354 = vmatprep.subr.mxu0 0.0
    %355 = vmatpush1.msra.mxu0 0.0
    %356 = vmatprep.subr.mxu0 0.0
    %357 = vmatpush1.msra.mxu0 0.0
    %358 = vmatprep.subr.mxu0 0.0
    %359 = vmatpush1.msra.mxu0 0.0
    %360 = vmatprep.subr.mxu0 0.0
    %361 = vmatpush1.msra.mxu0 0.0
    %362 = vmatprep.subr.mxu0 0.0
    %363 = vmatpush1.msra.mxu0 0.0
    %364 = vmatprep.subr.mxu0 0.0
    %365 = vmatpush1.msra.mxu0 0.0
    %366 = vmatprep.subr.mxu0 0.0
    %367 = vmatpush1.msra.mxu0 0.0
    %368 = vmatprep.subr.mxu0 0.0
    %369 = vmatpush1.msra.mxu0 0.0
    %370 = vmatprep.subr.mxu0 0.0
    %371 = vmatpush1.msra.mxu0 0.0
    %372 = vmatprep.subr.mxu0 0.0
    %373 = vmatpush1.msra.mxu0 0.0
    %374 = vmatprep.subr.mxu0 0.0
    %375 = vmatpush1.msra.mxu0 0.0
    %376 = vmatprep.subr.mxu0 0.0
    %377 = vmatpush1.msra.mxu0 0.0
    %378 = vmatprep.subr.mxu0 0.0
    %379 = vmatpush1.msra.mxu0 0.0
    %380 = vmatprep.subr.mxu0 0.0
    %381 = vmatpush1.msra.mxu0 0.0
    %382 = vmatprep.subr.mxu0 0.0
    %383 = vmatpush1.msra.mxu0 0.0
    %384 = vmatprep.subr.mxu0 0.0
    %385 = vmatpush1.msra.mxu0 0.0
    %386 = vmatprep.subr.mxu0 0.0
    %387 = vmatpush1.msra.mxu0 0.0
    %388 = vmatprep.subr.mxu0 0.0
    %389 = vmatpush1.msra.mxu0 0.0
    %390 = vmatprep.subr.mxu0 0.0
    %391 = vmatpush1.msra.mxu0 0.0
    %392 = vmatprep.subr.mxu0 0.0
    %393 = vmatpush1.msra.mxu0 0.0
    %394 = vmatprep.subr.mxu0 0.0
    %395 = vmatpush1.msra.mxu0 0.0
    %396 = vmatprep.subr.mxu0 0.0
    %397 = vmatpush1.msra.mxu0 0.0
    %398 = vmatprep.subr.mxu0 0.0
    %399 = vmatpush1.msra.mxu0 0.0
    %400 = vmatprep.subr.mxu0 0.0
    %401 = vmatpush1.msra.mxu0 0.0
    %402 = vmatprep.mubr.f32.mxu0 0.0
    %v403 = vand.u32 %v100, 4294901760
    %v404 = vsub.f32 %v100, %v403
    %v405 = vand.u32 %v404, 4294901760
    %406 = vmatmul.mubr.f32.gmra.mrb[0].mxu0 %v405
    %v407 = vpop.f32.mrb[0].mxu0
    %v408 = vadd.f32 %v333, %v407
    %v409 = vpop.f32.mrb[0].mxu0
    %410 = vdwg.mxu0
    %411 = vmatprep.subr.mxu0 0.0
    %v412 = vand.u32 %v96, 4294901760
    %v413 = vsub.f32 %v96, %v412
    %v414 = vand.u32 %v413, 4294901760
    %415 = vmatpush1.msra.mxu0 %v414
    %416 = vmatprep.subr.mxu0 0.0
    %v417 = vand.u32 %v97, 4294901760
    %v418 = vsub.f32 %v97, %v417
    %v419 = vand.u32 %v418, 4294901760
    %420 = vmatpush1.msra.mxu0 %v419
    %421 = vmatprep.subr.mxu0 0.0
    %422 = vmatpush1.msra.mxu0 0.0
    %423 = vmatprep.subr.mxu0 0.0
    %424 = vmatpush1.msra.mxu0 0.0
    %425 = vmatprep.subr.mxu0 0.0
    %426 = vmatpush1.msra.mxu0 0.0
    %427 = vmatprep.subr.mxu0 0.0
    %428 = vmatpush1.msra.mxu0 0.0
    %429 = vmatprep.subr.mxu0 0.0
    %430 = vmatpush1.msra.mxu0 0.0
    %431 = vmatprep.subr.mxu0 0.0
    %432 = vmatpush1.msra.mxu0 0.0
    %433 = vmatprep.subr.mxu0 0.0
    %434 = vmatpush1.msra.mxu0 0.0
    %435 = vmatprep.subr.mxu0 0.0
    %436 = vmatpush1.msra.mxu0 0.0
    %437 = vmatprep.subr.mxu0 0.0
    %438 = vmatpush1.msra.mxu0 0.0
    %439 = vmatprep.subr.mxu0 0.0
    %440 = vmatpush1.msra.mxu0 0.0
    %441 = vmatprep.subr.mxu0 0.0
    %442 = vmatpush1.msra.mxu0 0.0
    %443 = vmatprep.subr.mxu0 0.0
    %444 = vmatpush1.msra.mxu0 0.0
    %445 = vmatprep.subr.mxu0 0.0
    %446 = vmatpush1.msra.mxu0 0.0
    %447 = vmatprep.subr.mxu0 0.0
    %448 = vmatpush1.msra.mxu0 0.0
    %449 = vmatprep.subr.mxu0 0.0
    %450 = vmatpush1.msra.mxu0 0.0
    %451 = vmatprep.subr.mxu0 0.0
    %452 = vmatpush1.msra.mxu0 0.0
    %453 = vmatprep.subr.mxu0 0.0
    %454 = vmatpush1.msra.mxu0 0.0
    %455 = vmatprep.subr.mxu0 0.0
    %456 = vmatpush1.msra.mxu0 0.0
    %457 = vmatprep.subr.mxu0 0.0
    %458 = vmatpush1.msra.mxu0 0.0
    %459 = vmatprep.subr.mxu0 0.0
    %460 = vmatpush1.msra.mxu0 0.0
    %461 = vmatprep.subr.mxu0 0.0
    %462 = vmatpush1.msra.mxu0 0.0
    %463 = vmatprep.subr.mxu0 0.0
    %464 = vmatpush1.msra.mxu0 0.0
    %465 = vmatprep.subr.mxu0 0.0
    %466 = vmatpush1.msra.mxu0 0.0
    %467 = vmatprep.subr.mxu0 0.0
    %468 = vmatpush1.msra.mxu0 0.0
    %469 = vmatprep.subr.mxu0 0.0
    %470 = vmatpush1.msra.mxu0 0.0
    %471 = vmatprep.subr.mxu0 0.0
    %472 = vmatpush1.msra.mxu0 0.0
    %473 = vmatprep.subr.mxu0 0.0
    %474 = vmatpush1.msra.mxu0 0.0
    %475 = vmatprep.subr.mxu0 0.0
    %476 = vmatpush1.msra.mxu0 0.0
    %477 = vmatprep.subr.mxu0 0.0
    %478 = vmatpush1.msra.mxu0 0.0
    %479 = vmatprep.subr.mxu0 0.0
    %480 = vmatpush1.msra.mxu0 0.0
    %481 = vmatprep.mubr.f32.mxu0 0.0
    %v482 = vand.u32 %v100, 4294901760
    %483 = vmatmul.mubr.f32.gmra.mrb[0].mxu0 %v482
    %v484 = vpop.f32.mrb[0].mxu0
    %v485 = vadd.f32 %v408, %v484
    %v486 = vpop.f32.mrb[0].mxu0
    %487 = vdwg.mxu0
    %488 = vmatprep.subr.mxu0 0.0
    %v489 = vand.u32 %v96, 4294901760
    %490 = vmatpush1.msra.mxu0 %v489
    %491 = vmatprep.subr.mxu0 0.0
    %v492 = vand.u32 %v97, 4294901760
    %493 = vmatpush1.msra.mxu0 %v492
    %494 = vmatprep.subr.mxu0 0.0
    %495 = vmatpush1.msra.mxu0 0.0
    %496 = vmatprep.subr.mxu0 0.0
    %497 = vmatpush1.msra.mxu0 0.0
    %498 = vmatprep.subr.mxu0 0.0
    %499 = vmatpush1.msra.mxu0 0.0
    %500 = vmatprep.subr.mxu0 0.0
    %501 = vmatpush1.msra.mxu0 0.0
    %502 = vmatprep.subr.mxu0 0.0
    %503 = vmatpush1.msra.mxu0 0.0
    %504 = vmatprep.subr.mxu0 0.0
    %505 = vmatpush1.msra.mxu0 0.0
    %506 = vmatprep.subr.mxu0 0.0
    %507 = vmatpush1.msra.mxu0 0.0
    %508 = vmatprep.subr.mxu0 0.0
    %509 = vmatpush1.msra.mxu0 0.0
    %510 = vmatprep.subr.mxu0 0.0
    %511 = vmatpush1.msra.mxu0 0.0
    %512 = vmatprep.subr.mxu0 0.0
    %513 = vmatpush1.msra.mxu0 0.0
    %514 = vmatprep.subr.mxu0 0.0
    %515 = vmatpush1.msra.mxu0 0.0
    %516 = vmatprep.subr.mxu0 0.0
    %517 = vmatpush1.msra.mxu0 0.0
    %518 = vmatprep.subr.mxu0 0.0
    %519 = vmatpush1.msra.mxu0 0.0
    %520 = vmatprep.subr.mxu0 0.0
    %521 = vmatpush1.msra.mxu0 0.0
    %522 = vmatprep.subr.mxu0 0.0
    %523 = vmatpush1.msra.mxu0 0.0
    %524 = vmatprep.subr.mxu0 0.0
    %525 = vmatpush1.msra.mxu0 0.0
    %526 = vmatprep.subr.mxu0 0.0
    %527 = vmatpush1.msra.mxu0 0.0
    %528 = vmatprep.subr.mxu0 0.0
    %529 = vmatpush1.msra.mxu0 0.0
    %530 = vmatprep.subr.mxu0 0.0
    %531 = vmatpush1.msra.mxu0 0.0
    %532 = vmatprep.subr.mxu0 0.0
    %533 = vmatpush1.msra.mxu0 0.0
    %534 = vmatprep.subr.mxu0 0.0
    %535 = vmatpush1.msra.mxu0 0.0
    %536 = vmatprep.subr.mxu0 0.0
    %537 = vmatpush1.msra.mxu0 0.0
    %538 = vmatprep.subr.mxu0 0.0
    %539 = vmatpush1.msra.mxu0 0.0
    %540 = vmatprep.subr.mxu0 0.0
    %541 = vmatpush1.msra.mxu0 0.0
    %542 = vmatprep.subr.mxu0 0.0
    %543 = vmatpush1.msra.mxu0 0.0
    %544 = vmatprep.subr.mxu0 0.0
    %545 = vmatpush1.msra.mxu0 0.0
    %546 = vmatprep.subr.mxu0 0.0
    %547 = vmatpush1.msra.mxu0 0.0
    %548 = vmatprep.subr.mxu0 0.0
    %549 = vmatpush1.msra.mxu0 0.0
    %550 = vmatprep.subr.mxu0 0.0
    %551 = vmatpush1.msra.mxu0 0.0
    %552 = vmatprep.subr.mxu0 0.0
    %553 = vmatpush1.msra.mxu0 0.0
    %554 = vmatprep.mubr.f32.mxu0 0.0
    %v555 = vand.u32 %v100, 4294901760
    %556 = vmatmul.mubr.f32.gmra.mrb[0].mxu0 %v555
    %v557 = vpop.f32.mrb[0].mxu0
    %v558 = vadd.f32 %v485, %v557
    %v559 = vpop.f32.mrb[0].mxu0
    %560 = vdwg.mxu0
    %561 = vst [vmem:[#allocation6] sm:$0xff] %v558
    // Predicated region
    $region18: #{tpu_custom_call.1} parent=1 // pred_check
      _
    $region19: #{tpu_custom_call.1} parent=1 // pred_check_branch
      %563 = sbr.rel (0) target = $region21
    $region20: #{tpu_custom_call.1} parent=1 // pred_region
      %s565 = ssub.s32 128, 128
      %566 = vsyncadd [#allocation5], %s565
      %s568 = sshll.u32 [#allocation6], 4
      %s569 = int_to_ptr.vmem [resolvable:$true] %s568
      %571 = dma.vmem_to_hbm [thread:$0]  %s569, 128, %s2, [#allocation5]
    $region21: #{tpu_custom_call.1} parent=1 // pred_fallthru
      _
    // Predicated region
    $region22: #{tpu_custom_call.1} parent=1 // pred_check
      _
    $region23: #{tpu_custom_call.1} parent=1 // pred_check_branch
      %573 = sbr.rel (0) target = $region25
    $region24: #{tpu_custom_call.1} parent=1 // pred_region
      %574 = dma.done [#allocation5], 128
    $region25: #{tpu_custom_call.1} parent=1 // pred_fallthru
      _
    %575 = vsyncpa [#allocation4], 1
    %576 = vsyncpa [#allocation5], 1

</llo_original>
